<compile_context>
chip_gen: v7x
topology: tpu7x:2x2x1
jax: 0.10.0
libtpu: 0.0.40
codegen_flags: <defaults>
</compile_context>

<pallas_src>
import functools

import numpy as np
import jax
import jax.numpy as jnp
from jax import lax
from jax.experimental import pallas as pl
from jax.experimental.pallas import tpu as pltpu

# ---- deterministic "config" (Matching.__init__) ----
CONFIG = {
    "thr": 0.2,
    "border_rm": 2,
    "match_type": "dual_softmax",
    "dsmax_temperature": 0.1,
    "similarity": True,  # SIM=True -> cosine-similarity branch
}

# Plain Python floats only (jnp/np scalar objects captured by a kernel closure
# trip Pallas' "captures constants" check).
NEG = -1.0e30      # masking value for padded rows / columns
NEG_HM = -3.0e38   # init for the running column-max of the h score


def _round_up(x, m):
    return ((x + m - 1) // m) * m


def _clamp_vmem(nbytes):
    # +4 MiB headroom for compiler-internal scratch, floor 16 MiB, cap 48 MiB
    # (v7x has only 64 MiB physical VMEM per TensorCore).
    return int(min(48 << 20, max(int(nbytes) + (4 << 20), 16 << 20)))


def _l2_normalize_bf16(feat, scale=None):
    """L2-normalize along channels (the reference's /sqrt(C) pre-scale cancels
    with the L2 norm), optionally fold a scalar (1/temperature), cast to bf16."""
    x = feat.astype(jnp.float32)
    r = lax.rsqrt(jnp.sum(x * x, axis=-1, keepdims=True) + 1e-12)
    if scale is not None:
        r = r * scale
    return (x * r).astype(jnp.bfloat16)


# --------------------------- fused single-pass ---------------------------- #
def _fused_kernel(f0_ref, f1_ref,
                  sim_ref, conf_ref, conf0_ref, conf1_ref, mask_ref,
                  *, thr, L, S):
    Lp = f0_ref.shape[1]
    Sp = f1_ref.shape[1]

    sim = lax.dot_general(
        f0_ref[0], f1_ref[0],
        dimension_numbers=(((1,), (1,)), ((), ())),
        preferred_element_type=jnp.float32)                    # (Lp, Sp)

    if Lp != L or Sp != S:
        row_ids = lax.broadcasted_iota(jnp.int32, (Lp, Sp), 0)
        col_ids = lax.broadcasted_iota(jnp.int32, (Lp, Sp), 1)
        valid = (row_ids < L) & (col_ids < S)
        sim = jnp.where(valid, sim, jnp.full_like(sim, NEG))
    sim_ref[0] = sim

    # softmax over S (rows)  -- exact division for the stored values
    m_s = jnp.max(sim, axis=1, keepdims=True)
    e_s = jnp.exp(sim - m_s)
    conf1 = e_s / jnp.sum(e_s, axis=1, keepdims=True)
    # softmax over L (columns)
    m_l = jnp.max(sim, axis=0, keepdims=True)
    e_l = jnp.exp(sim - m_l)
    conf0 = e_l / jnp.sum(e_l, axis=0, keepdims=True)

    conf = conf0 * conf1
    conf_ref[0] = conf
    conf0_ref[0] = conf0
    conf1_ref[0] = conf1

    # get_coarse_match masks (== keeps ties, like torch's `== max`)
    thr_mask = conf > thr
    i_mask = conf == jnp.max(conf, axis=1, keepdims=True)      # row-wise max
    j_mask = conf == jnp.max(conf, axis=0, keepdims=True)      # col-wise max
    mutual = thr_mask & i_mask & j_mask
    packed = (mutual.astype(jnp.int32)
              + 2 * i_mask.astype(jnp.int32)
              + 4 * j_mask.astype(jnp.int32))
    mask_ref[0] = packed.astype(jnp.int8)


# ----------------------------- two-pass path ------------------------------ #
def _pass1_kernel(f0_ref, f1_ref,
                  sim_ref, ms_ref, rs_ref, cm_ref, cs_ref, hm_ref,
                  *, L, S):
    t = pl.program_id(1)
    TL = f0_ref.shape[1]
    Sp = f1_ref.shape[1]

    @pl.when(t == 0)
    def _init():
        cm_ref[0] = jnp.full((1, Sp), NEG, jnp.float32)
        cs_ref[0] = jnp.zeros((1, Sp), jnp.float32)
        hm_ref[0] = jnp.full((1, Sp), NEG_HM, jnp.float32)

    sim = lax.dot_general(
        f0_ref[0], f1_ref[0],
        dimension_numbers=(((1,), (1,)), ((), ())),
        preferred_element_type=jnp.float32)                    # (TL, Sp)

    row_ids = t * TL + lax.broadcasted_iota(jnp.int32, (TL, Sp), 0)
    col_ids = lax.broadcasted_iota(jnp.int32, (TL, Sp), 1)
    valid = (row_ids < L) & (col_ids < S)
    sim = jnp.where(valid, sim, jnp.full_like(sim, NEG))
    sim_ref[0] = sim

    # Row (over-S) softmax stats -> tiny f32 planes reused verbatim by pass 2
    # so the pass-2 `h == hm` equality is bit-exact.
    m_s = jnp.max(sim, axis=1, keepdims=True)                  # (TL, 1)
    rs = jnp.sum(jnp.exp(sim - m_s), axis=1, keepdims=True)    # (TL, 1)
    ms_ref[0] = m_s
    rs_ref[0] = rs

    # Online column (over-L) softmax stats, resident across the L-tile axis.
    cm_old = cm_ref[0]
    cm_new = jnp.maximum(cm_old, jnp.max(sim, axis=0, keepdims=True))
    rescale = jnp.exp(cm_old - cm_new)
    cs_ref[0] = cs_ref[0] * rescale + jnp.sum(jnp.exp(sim - cm_new),
                                              axis=0, keepdims=True)
    cm_ref[0] = cm_new

    # Rescale-free per-column score; argmax over L == argmax over L of conf.
    h = 2.0 * sim - m_s - jnp.log(rs)
    hm_ref[0] = jnp.maximum(hm_ref[0], jnp.max(h, axis=0, keepdims=True))


def _pass2_kernel(f0_ref, f1_ref, ms_ref, rs_ref, cm_ref, cs_ref, hm_ref,
                  conf_ref, conf0_ref, conf1_ref, mask_ref,
                  *, thr, L, S):
    t = pl.program_id(1)
    TL = f0_ref.shape[1]
    Sp = f1_ref.shape[1]

    # Recompute sim on the (otherwise idle) MXU from the same bf16 operands as
    # pass 1 instead of reading the f32 sim plane back from HBM (-4 B/elem).
    sim = lax.dot_general(
        f0_ref[0], f1_ref[0],
        dimension_numbers=(((1,), (1,)), ((), ())),
        preferred_element_type=jnp.float32)
    row_ids = t * TL + lax.broadcasted_iota(jnp.int32, (TL, Sp), 0)
    col_ids = lax.broadcasted_iota(jnp.int32, (TL, Sp), 1)
    valid = (row_ids < L) & (col_ids < S)
    sim = jnp.where(valid, sim, jnp.full_like(sim, NEG))

    m_s = ms_ref[0]     # (TL, 1)  pass-1 values, bit-exact
    rs = rs_ref[0]      # (TL, 1)
    cm = cm_ref[0]      # (1, Sp)
    cs = cs_ref[0]      # (1, Sp)
    hm = hm_ref[0]      # (1, Sp)

    conf1 = jnp.exp(sim - m_s) / rs
    conf0 = jnp.exp(sim - cm) / cs
    conf = conf0 * conf1
    conf_ref[0] = conf
    conf0_ref[0] = conf0
    conf1_ref[0] = conf1

    thr_mask = conf > thr
    i_mask = conf == jnp.max(conf, axis=1, keepdims=True)      # row max (S)
    h = 2.0 * sim - m_s - jnp.log(rs)
    j_mask = h == hm                                           # col max (L)
    mutual = thr_mask & i_mask & j_mask
    packed = (mutual.astype(jnp.int32)
              + 2 * i_mask.astype(jnp.int32)
              + 4 * j_mask.astype(jnp.int32))
    mask_ref[0] = packed.astype(jnp.int8)


# ------------------------------- wrapper ----------------------------------- #
def matching_pallas(feat_c0, feat_c1, *, temperature, thr,
                    block_l=128, force_two_pass=False,
                    fused_vmem_budget=40 << 20):
    """Returns (conf, conf0, conf1, sim, packed_mask[int8]), each [N, L, S]."""
    N, L, C = feat_c0.shape
    S = feat_c1.shape[1]
    thr = float(thr)

    Sp = _round_up(S, 128)          # lane-dense outputs

    # Normalize once in the wrapper (hoisted out of the per-tile loop), fold
    # 1/temperature into feat0's row scale, feed bf16 to the MXU.
    f0n = _l2_normalize_bf16(feat_c0, scale=1.0 / float(temperature))
    f1n = _l2_normalize_bf16(feat_c1)
    if Sp != S:
        f1n = jnp.pad(f1n, ((0, 0), (0, Sp - S), (0, 0)))

    # ---- fused single-pass: whole (Lp, Sp) plane lives in VMEM ----
    Lp_f = _round_up(L, 32)
    fused_ws = 2 * Lp_f * Sp * (4 * 4 + 1) + 4 * (Lp_f + Sp) * C
    use_fused = (not force_two_pass) and fused_ws <= fused_vmem_budget

    if use_fused:
        Lp = Lp_f
        f0p = jnp.pad(f0n, ((0, 0), (0, Lp - L), (0, 0))) if Lp != L else f0n
        plane = jax.ShapeDtypeStruct((N, Lp, Sp), jnp.float32)
        plane_i8 = jax.ShapeDtypeStruct((N, Lp, Sp), jnp.int8)
        tile = pl.BlockSpec((1, Lp, Sp), lambda b: (b, 0, 0))
        sim_p, conf_p, conf0_p, conf1_p, mask_p = pl.pallas_call(
            functools.partial(_fused_kernel, thr=thr, L=L, S=S),
            out_shape=(plane, plane, plane, plane, plane_i8),
            grid_spec=pltpu.PrefetchScalarGridSpec(
                num_scalar_prefetch=0,
                grid=(N,),
                in_specs=[pl.BlockSpec((1, Lp, C), lambda b: (b, 0, 0)),
                          pl.BlockSpec((1, Sp, C), lambda b: (b, 0, 0))],
                out_specs=[tile, tile, tile, tile, tile]),
            compiler_params=pltpu.CompilerParams(
                dimension_semantics=("parallel",),
                vmem_limit_bytes=_clamp_vmem(fused_ws)),
        )(f0p, f1n)
    else:
        # ---- two-pass tiled path ----
        if L <= block_l:
            TL = _round_up(L, 32)
        else:
            TL = block_l
            while TL > 32 and (2 * TL * Sp * 13 + 4 * (TL + Sp) * C) > fused_vmem_budget:
                TL //= 2
        Lp = _round_up(L, TL)
        n_lt = Lp // TL
        f0p = jnp.pad(f0n, ((0, 0), (0, Lp - L), (0, 0))) if Lp != L else f0n

        plane = jax.ShapeDtypeStruct((N, Lp, Sp), jnp.float32)
        plane_i8 = jax.ShapeDtypeStruct((N, Lp, Sp), jnp.int8)
        rowvec = jax.ShapeDtypeStruct((N, Lp, 1), jnp.float32)
        colvec = jax.ShapeDtypeStruct((N, 1, Sp), jnp.float32)

        tile_spec = pl.BlockSpec((1, TL, Sp), lambda b, t: (b, t, 0))
        f0_spec = pl.BlockSpec((1, TL, C), lambda b, t: (b, t, 0))
        f1_spec = pl.BlockSpec((1, Sp, C), lambda b, t: (b, 0, 0))
        row_spec = pl.BlockSpec((1, TL, 1), lambda b, t: (b, t, 0))
        col_spec = pl.BlockSpec((1, 1, Sp), lambda b, t: (b, 0, 0))

        ws1 = 2 * TL * Sp * 4 + 4 * (TL + Sp) * C + 6 * Sp * 4 + 4 * TL * 4
        sim_p, ms_p, rs_p, cm, cs, hm = pl.pallas_call(
            functools.partial(_pass1_kernel, L=L, S=S),
            out_shape=(plane, rowvec, rowvec, colvec, colvec, colvec),
            grid_spec=pltpu.PrefetchScalarGridSpec(
                num_scalar_prefetch=0,
                grid=(N, n_lt),
                in_specs=[f0_spec, f1_spec],
                out_specs=[tile_spec, row_spec, row_spec,
                           col_spec, col_spec, col_spec]),
            compiler_params=pltpu.CompilerParams(
                dimension_semantics=("parallel", "arbitrary"),
                vmem_limit_bytes=_clamp_vmem(ws1)),
        )(f0p, f1n)

        ws2 = 2 * TL * Sp * 13 + 4 * (TL + Sp) * C + 6 * Sp * 4 + 4 * TL * 4
        conf_p, conf0_p, conf1_p, mask_p = pl.pallas_call(
            functools.partial(_pass2_kernel, thr=thr, L=L, S=S),
            out_shape=(plane, plane, plane, plane_i8),
            grid_spec=pltpu.PrefetchScalarGridSpec(
                num_scalar_prefetch=0,
                grid=(N, n_lt),
                in_specs=[f0_spec, f1_spec, row_spec, row_spec,
                          col_spec, col_spec, col_spec],
                out_specs=[tile_spec, tile_spec, tile_spec, tile_spec]),
            compiler_params=pltpu.CompilerParams(
                dimension_semantics=("parallel", "parallel"),
                vmem_limit_bytes=_clamp_vmem(ws2)),
        )(f0p, f1n, ms_p, rs_p, cm, cs, hm)

    if Lp != L or Sp != S:
        sim_p = sim_p[:, :L, :S]
        conf_p = conf_p[:, :L, :S]
        conf0_p = conf0_p[:, :L, :S]
        conf1_p = conf1_p[:, :L, :S]
        mask_p = mask_p[:, :L, :S]

    return conf_p, conf0_p, conf1_p, sim_p, mask_p


def matching_forward(feat_c0, feat_c1, data, config=CONFIG,
                     mask_c0=None, mask_c1=None):
    """Mirrors Matching.forward for match_type='dual_softmax', similarity=True."""
    # (mask_c0 / mask_c1 are unused by the reference dual_softmax code path.)
    conf, conf0, conf1, sim, packed = matching_pallas(
        feat_c0, feat_c1,
        temperature=config["dsmax_temperature"],
        thr=config["thr"])
    data.update({
        "conf_matrix": conf,
        "conf_matrix0": conf0,
        "conf_matrix1": conf1,
        "sim_matrix": sim,
    })

    # --- get_coarse_match: dense reductions on-device; only small arrays host ---
    mask = (packed & 1) != 0
    i_mask = (packed & 2) != 0
    j_mask = (packed & 4) != 0
    mask_v = jnp.any(mask, axis=2)                                  # (N, L)
    all_j_ids = jnp.argmax(mask, axis=2).astype(jnp.int32)          # (N, L)
    mconf_all = jnp.take_along_axis(conf, all_j_ids[:, :, None], axis=2)[:, :, 0]

    # TODO(synk): torch.where-style dynamic-length index extraction has no
    # static-shape Pallas equivalent; done on host from the small (N, L) arrays.
    mask_v_np = np.asarray(jax.device_get(mask_v))
    b_ids, i_ids = np.nonzero(mask_v_np)
    j_ids = np.asarray(jax.device_get(all_j_ids))[b_ids, i_ids]
    mconf = np.asarray(jax.device_get(mconf_all))[b_ids, i_ids]

    data.update({
        "b_ids": b_ids,
        "i_ids": i_ids,
        "j_ids": j_ids,
        "gt_mask": mconf == 0,
        "mask": mask,
        "m_bids": b_ids[mconf != 0],
        "mconf": mconf[mconf != 0],
        "i_mask": i_mask,
        "j_mask": j_mask,
    })
    return data


if __name__ == "__main__":
    key = jax.random.PRNGKey(0)
    k0, k1 = jax.random.split(key)

    N, L, S, C = 2, 64, 64, 128
    feat_c0 = jax.random.normal(k0, (N, L, C), dtype=jnp.float32)
    feat_c1 = jax.random.normal(k1, (N, S, C), dtype=jnp.float32)

    # Fused single-pass path (whole plane fits VMEM).
    outs = matching_pallas(feat_c0, feat_c1,
                           temperature=CONFIG["dsmax_temperature"],
                           thr=CONFIG["thr"])
    jax.block_until_ready(outs)

    # Two-pass tiled path, exercised with >1 L tiles and row/col padding.
    k2, k3 = jax.random.split(k1)
    f0b = jax.random.normal(k2, (1, 160, C), dtype=jnp.float32)
    f1b = jax.random.normal(k3, (1, 200, C), dtype=jnp.float32)
    outs2 = matching_pallas(f0b, f1b,
                            temperature=CONFIG["dsmax_temperature"],
                            thr=CONFIG["thr"],
                            force_two_pass=True)
    jax.block_until_ready(outs2)

    # Full forward (kernels + coarse-match extraction).
    data = {"len_t0": L, "len_t1": S}
    matching_forward(feat_c0, feat_c1, data)

    print("KERNEL_OK")
</pallas_src>

<mosaic_0001>
module attributes {stable_mosaic.version = 11 : i64} {
  func.func @_fused_kernel(%arg0: i32, %arg1: memref<1x64x128xbf16, #tpu.memory_space<vmem>>, %arg2: memref<1x128x128xbf16, #tpu.memory_space<vmem>>, %arg3: memref<1x64x128xf32, #tpu.memory_space<vmem>>, %arg4: memref<1x64x128xf32, #tpu.memory_space<vmem>>, %arg5: memref<1x64x128xf32, #tpu.memory_space<vmem>>, %arg6: memref<1x64x128xf32, #tpu.memory_space<vmem>>, %arg7: memref<1x64x128xi8, #tpu.memory_space<vmem>>) attributes {dimension_semantics = [#tpu.dimension_semantics<parallel>], iteration_bounds = array<i64: 2>, scalar_prefetch = 0 : i64, scratch_operands = 0 : i64, tpu.core_type = #tpu.core_type<tc>, window_params = [{transform_indices = @transform_0, window_bounds = array<i64: 1, 64, 128>}, {transform_indices = @transform_1, window_bounds = array<i64: 1, 128, 128>}, {transform_indices = @transform_2, window_bounds = array<i64: 1, 64, 128>}, {transform_indices = @transform_3, window_bounds = array<i64: 1, 64, 128>}, {transform_indices = @transform_4, window_bounds = array<i64: 1, 64, 128>}, {transform_indices = @transform_5, window_bounds = array<i64: 1, 64, 128>}, {transform_indices = @transform_6, window_bounds = array<i64: 1, 64, 128>}]} {
    %c0 = arith.constant 0 : index
    %c0_0 = arith.constant 0 : index
    %c0_1 = arith.constant 0 : index
    %0 = vector.load %arg1[%c0, %c0_0, %c0_1] : memref<1x64x128xbf16, #tpu.memory_space<vmem>>, vector<1x64x128xbf16>
    %1 = vector.shape_cast %0 : vector<1x64x128xbf16> to vector<64x128xbf16>
    %c0_2 = arith.constant 0 : index
    %c0_3 = arith.constant 0 : index
    %c0_4 = arith.constant 0 : index
    %2 = vector.load %arg2[%c0_2, %c0_3, %c0_4] : memref<1x128x128xbf16, #tpu.memory_space<vmem>>, vector<1x128x128xbf16>
    %3 = vector.shape_cast %2 : vector<1x128x128xbf16> to vector<128x128xbf16>
    %cst = arith.constant dense<0.000000e+00> : vector<64x128xf32>
    %4 = tpu.matmul %1, %3, %cst {dimension_numbers = #tpu.dot_dimension_numbers<[1], [1], [0], [0], [0, 0, 1, 0], [], []>} : vector<64x128xbf16>, vector<128x128xbf16>, vector<64x128xf32> -> vector<64x128xf32>
    %5 = tpu.iota {dimensions = array<i32: 0>} : vector<64x128xi32>
    %6 = tpu.iota {dimensions = array<i32: 1>} : vector<64x128xi32>
    %c64_i32 = arith.constant 64 : i32
    %7 = vector.broadcast %c64_i32 : i32 to vector<64x128xi32>
    %8 = arith.cmpi slt, %5, %7 : vector<64x128xi32>
    %c64_i32_5 = arith.constant 64 : i32
    %9 = vector.broadcast %c64_i32_5 : i32 to vector<64x128xi32>
    %10 = arith.cmpi slt, %6, %9 : vector<64x128xi32>
    %11 = arith.andi %8, %10 : vector<64x128xi1>
    %cst_6 = arith.constant -1.000000e+30 : f32
    %12 = vector.broadcast %cst_6 : f32 to vector<64x128xf32>
    %13 = arith.select %11, %4, %12 : vector<64x128xi1>, vector<64x128xf32>
    %c0_7 = arith.constant 0 : index
    %c0_8 = arith.constant 0 : index
    %c0_9 = arith.constant 0 : index
    %14 = vector.load %arg3[%c0_7, %c0_8, %c0_9] : memref<1x64x128xf32, #tpu.memory_space<vmem>>, vector<1x64x128xf32>
    %15 = vector.shape_cast %14 : vector<1x64x128xf32> to vector<64x128xf32>
    %16 = vector.shape_cast %13 : vector<64x128xf32> to vector<1x64x128xf32>
    tpu.vector_store %arg3[%c0_7, %c0_8, %c0_9], %16 {strides = array<i32>} : memref<1x64x128xf32, #tpu.memory_space<vmem>>, vector<1x64x128xf32>,
    %cst_10 = arith.constant dense<0xFF800000> : vector<64xf32>
    %17 = vector.multi_reduction <maximumf>, %13, %cst_10 [1] : vector<64x128xf32> to vector<64xf32>
    %18 = vector.shape_cast %17 : vector<64xf32> to vector<64x1xf32>
    %19 = vector.broadcast %18 : vector<64x1xf32> to vector<64x128xf32>
    %20 = arith.subf %13, %19 : vector<64x128xf32>
    %21 = math.exp %20 : vector<64x128xf32>
    %cst_11 = arith.constant dense<0.000000e+00> : vector<64xf32>
    %22 = vector.multi_reduction <add>, %21, %cst_11 [1] : vector<64x128xf32> to vector<64xf32>
    %23 = vector.shape_cast %22 : vector<64xf32> to vector<64x1xf32>
    %24 = vector.broadcast %23 : vector<64x1xf32> to vector<64x128xf32>
    %25 = arith.divf %21, %24 : vector<64x128xf32>
    %cst_12 = arith.constant dense<0xFF800000> : vector<128xf32>
    %26 = vector.multi_reduction <maximumf>, %13, %cst_12 [0] : vector<64x128xf32> to vector<128xf32>
    %27 = vector.shape_cast %26 : vector<128xf32> to vector<1x128xf32>
    %28 = vector.broadcast %27 : vector<1x128xf32> to vector<64x128xf32>
    %29 = arith.subf %13, %28 : vector<64x128xf32>
    %30 = math.exp %29 : vector<64x128xf32>
    %cst_13 = arith.constant dense<0.000000e+00> : vector<128xf32>
    %31 = vector.multi_reduction <add>, %30, %cst_13 [0] : vector<64x128xf32> to vector<128xf32>
    %32 = vector.shape_cast %31 : vector<128xf32> to vector<1x128xf32>
    %33 = vector.broadcast %32 : vector<1x128xf32> to vector<64x128xf32>
    %34 = arith.divf %30, %33 : vector<64x128xf32>
    %35 = arith.mulf %34, %25 : vector<64x128xf32>
    %c0_14 = arith.constant 0 : index
    %c0_15 = arith.constant 0 : index
    %c0_16 = arith.constant 0 : index
    %36 = vector.load %arg4[%c0_14, %c0_15, %c0_16] : memref<1x64x128xf32, #tpu.memory_space<vmem>>, vector<1x64x128xf32>
    %37 = vector.shape_cast %36 : vector<1x64x128xf32> to vector<64x128xf32>
    %38 = vector.shape_cast %35 : vector<64x128xf32> to vector<1x64x128xf32>
    tpu.vector_store %arg4[%c0_14, %c0_15, %c0_16], %38 {strides = array<i32>} : memref<1x64x128xf32, #tpu.memory_space<vmem>>, vector<1x64x128xf32>,
    %c0_17 = arith.constant 0 : index
    %c0_18 = arith.constant 0 : index
    %c0_19 = arith.constant 0 : index
    %39 = vector.load %arg5[%c0_17, %c0_18, %c0_19] : memref<1x64x128xf32, #tpu.memory_space<vmem>>, vector<1x64x128xf32>
    %40 = vector.shape_cast %39 : vector<1x64x128xf32> to vector<64x128xf32>
    %41 = vector.shape_cast %34 : vector<64x128xf32> to vector<1x64x128xf32>
    tpu.vector_store %arg5[%c0_17, %c0_18, %c0_19], %41 {strides = array<i32>} : memref<1x64x128xf32, #tpu.memory_space<vmem>>, vector<1x64x128xf32>,
    %c0_20 = arith.constant 0 : index
    %c0_21 = arith.constant 0 : index
    %c0_22 = arith.constant 0 : index
    %42 = vector.load %arg6[%c0_20, %c0_21, %c0_22] : memref<1x64x128xf32, #tpu.memory_space<vmem>>, vector<1x64x128xf32>
    %43 = vector.shape_cast %42 : vector<1x64x128xf32> to vector<64x128xf32>
    %44 = vector.shape_cast %25 : vector<64x128xf32> to vector<1x64x128xf32>
    tpu.vector_store %arg6[%c0_20, %c0_21, %c0_22], %44 {strides = array<i32>} : memref<1x64x128xf32, #tpu.memory_space<vmem>>, vector<1x64x128xf32>,
    %cst_23 = arith.constant 2.000000e-01 : f32
    %45 = vector.broadcast %cst_23 : f32 to vector<64x128xf32>
    %46 = arith.cmpf ogt, %35, %45 : vector<64x128xf32>
    %cst_24 = arith.constant dense<0xFF800000> : vector<64xf32>
    %47 = vector.multi_reduction <maximumf>, %35, %cst_24 [1] : vector<64x128xf32> to vector<64xf32>
    %48 = vector.shape_cast %47 : vector<64xf32> to vector<64x1xf32>
    %49 = vector.broadcast %48 : vector<64x1xf32> to vector<64x128xf32>
    %50 = arith.cmpf oeq, %35, %49 : vector<64x128xf32>
    %cst_25 = arith.constant dense<0xFF800000> : vector<128xf32>
    %51 = vector.multi_reduction <maximumf>, %35, %cst_25 [0] : vector<64x128xf32> to vector<128xf32>
    %52 = vector.shape_cast %51 : vector<128xf32> to vector<1x128xf32>
    %53 = vector.broadcast %52 : vector<1x128xf32> to vector<64x128xf32>
    %54 = arith.cmpf oeq, %35, %53 : vector<64x128xf32>
    %55 = arith.andi %46, %50 : vector<64x128xi1>
    %56 = arith.andi %55, %54 : vector<64x128xi1>
    %57 = arith.extui %56 : vector<64x128xi1> to vector<64x128xi32>
    %58 = arith.extui %50 : vector<64x128xi1> to vector<64x128xi32>
    %c2_i32 = arith.constant 2 : i32
    %59 = vector.broadcast %c2_i32 : i32 to vector<64x128xi32>
    %60 = arith.muli %59, %58 : vector<64x128xi32>
    %61 = arith.addi %57, %60 : vector<64x128xi32>
    %62 = arith.extui %54 : vector<64x128xi1> to vector<64x128xi32>
    %c4_i32 = arith.constant 4 : i32
    %63 = vector.broadcast %c4_i32 : i32 to vector<64x128xi32>
    %64 = arith.muli %63, %62 : vector<64x128xi32>
    %65 = arith.addi %61, %64 : vector<64x128xi32>
    %66 = arith.trunci %65 : vector<64x128xi32> to vector<64x128xi8>
    %c0_26 = arith.constant 0 : index
    %c0_27 = arith.constant 0 : index
    %c0_28 = arith.constant 0 : index
    %67 = vector.load %arg7[%c0_26, %c0_27, %c0_28] : memref<1x64x128xi8, #tpu.memory_space<vmem>>, vector<1x64x128xi8>
    %68 = vector.shape_cast %67 : vector<1x64x128xi8> to vector<64x128xi8>
    %69 = vector.shape_cast %66 : vector<64x128xi8> to vector<1x64x128xi8>
    tpu.vector_store %arg7[%c0_26, %c0_27, %c0_28], %69 {strides = array<i32>} : memref<1x64x128xi8, #tpu.memory_space<vmem>>, vector<1x64x128xi8>,
    return
  }
  func.func @transform_0(%arg0: i32) -> (i32, i32, i32) {
    %c0_i32 = arith.constant 0 : i32
    %c0_i32_0 = arith.constant 0 : i32
    %c0_i32_1 = arith.constant 0 : i32
    return %arg0, %c0_i32, %c0_i32_0 : i32, i32, i32
  }
  func.func @transform_1(%arg0: i32) -> (i32, i32, i32) {
    %c0_i32 = arith.constant 0 : i32
    %c0_i32_0 = arith.constant 0 : i32
    %c0_i32_1 = arith.constant 0 : i32
    return %arg0, %c0_i32, %c0_i32_0 : i32, i32, i32
  }
  func.func @transform_2(%arg0: i32) -> (i32, i32, i32) {
    %c0_i32 = arith.constant 0 : i32
    %c0_i32_0 = arith.constant 0 : i32
    %c0_i32_1 = arith.constant 0 : i32
    return %arg0, %c0_i32, %c0_i32_0 : i32, i32, i32
  }
  func.func @transform_3(%arg0: i32) -> (i32, i32, i32) {
    %c0_i32 = arith.constant 0 : i32
    %c0_i32_0 = arith.constant 0 : i32
    %c0_i32_1 = arith.constant 0 : i32
    return %arg0, %c0_i32, %c0_i32_0 : i32, i32, i32
  }
  func.func @transform_4(%arg0: i32) -> (i32, i32, i32) {
    %c0_i32 = arith.constant 0 : i32
    %c0_i32_0 = arith.constant 0 : i32
    %c0_i32_1 = arith.constant 0 : i32
    return %arg0, %c0_i32, %c0_i32_0 : i32, i32, i32
  }
  func.func @transform_5(%arg0: i32) -> (i32, i32, i32) {
    %c0_i32 = arith.constant 0 : i32
    %c0_i32_0 = arith.constant 0 : i32
    %c0_i32_1 = arith.constant 0 : i32
    return %arg0, %c0_i32, %c0_i32_0 : i32, i32, i32
  }
  func.func @transform_6(%arg0: i32) -> (i32, i32, i32) {
    %c0_i32 = arith.constant 0 : i32
    %c0_i32_0 = arith.constant 0 : i32
    %c0_i32_1 = arith.constant 0 : i32
    return %arg0, %c0_i32, %c0_i32_0 : i32, i32, i32
  }
}

</mosaic_0001>

<llo_original>
// kernel: tpu_custom_call.1
$region0: #{tpu_custom_call.1}
  #allocation0 [shape = 'u32[]', space=smem, size = 0x4, offset = 0x4, fixed_abs, tag = 'smem constant byte address 0x4 - core index']
  #allocation1 [shape = 'u32[144,128]{1,0:T(1,128)}', space=vmem, size = 0x12000, scoped, tag = 'internal scratch']
  %s0 = inlined_call_operand.hbm [shape: bf16[2,64,128], index: 0, kind: input, shape index: {}]
  %s1 = inlined_call_operand.hbm [shape: bf16[2,128,128], index: 1, kind: input, shape index: {}]
  %s2 = inlined_call_operand.hbm [shape: f32[2,64,128], index: 2, kind: output, shape index: {0}]
  %s3 = inlined_call_operand.hbm [shape: f32[2,64,128], index: 3, kind: output, shape index: {1}]
  %s4 = inlined_call_operand.hbm [shape: f32[2,64,128], index: 4, kind: output, shape index: {2}]
  %s5 = inlined_call_operand.hbm [shape: f32[2,64,128], index: 5, kind: output, shape index: {3}]
  %s6 = inlined_call_operand.hbm [shape: s8[2,64,128], index: 6, kind: output, shape index: {4}]
  %7 = xla_tuple %s2, %s3, %s4, %s5, %s6
  %s8 = sld [smem:[#allocation0]]
  $region81: #{tpu_custom_call.1} parent=0
    _
  %s10 = ssub.s32 1, %s8
  %s11 = scalar_select 0, %s10, %s8
  $region1: #{tpu_custom_call.1} parent=0
    #allocation2 [shape = 'u8[32768]{0}', space=vmem, size = 0x8000, scoped, tag = 'input window, operand 0']
    #allocation3 [shape = 's32[2]{0}', space=sflag, size = 0x8, scoped, tag = 'scoped memory for tpu_custom_call.1']
    #allocation4 [shape = 's32[2]{0}', space=sflag, size = 0x8, scoped, tag = 'scoped memory for tpu_custom_call.1']
    #allocation5 [shape = 'u8[65536]{0}', space=vmem, size = 0x10000, scoped, tag = 'input window, operand 1']
    #allocation6 [shape = 's32[2]{0}', space=sflag, size = 0x8, scoped, tag = 'scoped memory for tpu_custom_call.1']
    #allocation7 [shape = 'u8[65536]{0}', space=vmem, size = 0x10000, scoped, tag = 'output window, operand 0']
    #allocation8 [shape = 'u8[65536]{0}', space=vmem, size = 0x10000, scoped, tag = 'output window, operand 1']
    #allocation9 [shape = 's32[2]{0}', space=sflag, size = 0x8, scoped, tag = 'scoped memory for tpu_custom_call.1']
    #allocation10 [shape = 'u8[65536]{0}', space=vmem, size = 0x10000, scoped, tag = 'output window, operand 2']
    #allocation11 [shape = 'u8[65536]{0}', space=vmem, size = 0x10000, scoped, tag = 'output window, operand 3']
    #allocation12 [shape = 's32[2]{0}', space=sflag, size = 0x8, scoped, tag = 'scoped memory for tpu_custom_call.1']
    #allocation13 [shape = 'u8[16384]{0}', space=vmem, size = 0x4000, scoped, tag = 'output window, operand 4']
    %12 = vsyncpa [#allocation3], 0
    %s13 = scalar_lea.sflag [#allocation3], 1
    %14 = vsyncpa %s13, 0
    %15 = vsyncpa [#allocation6], 0
    %s16 = scalar_lea.sflag [#allocation6], 1
    %17 = vsyncpa %s16, 0
    %18 = vsyncpa [#allocation4], 0
    %s19 = scalar_lea.sflag [#allocation4], 1
    %20 = vsyncpa %s19, 0
    %21 = vsyncpa [#allocation9], 0
    %s22 = scalar_lea.sflag [#allocation9], 1
    %23 = vsyncpa %s22, 0
    %24 = vsyncpa [#allocation12], 0
    %s25 = scalar_lea.sflag [#allocation12], 1
    %26 = vsyncpa %s25, 0
    loop: start=0, step=1, limit=4
    $region2: #{tpu_custom_call.1} parent=1 // loop_pre_header
      _
    $region3: #{tpu_custom_call.1} parent=1 // loop_header
      %s28 = sphi 0, %s32
      %p29 = scmp.ge.s32.totalorder %s28, 4
      %s38 = sphi 0, %s40
      %s41 = sphi 0, %s38
      %s42 = sphi 0, %s41
      %s58 = sphi 0, %s42
      %s64 = sphi 0, %s66
      %s67 = sphi 0, %s64
      %s68 = sphi 0, %s67
      %s84 = sphi 0, %s68
      %s90 = sphi 0, %s92
      %s93 = sphi 0, %s90
      %s94 = sphi 0, %s93
      %s110 = sphi 0, %s94
      %s116 = sphi 0, %s118
      %s119 = sphi 0, %s116
      %s120 = sphi 0, %s119
      %s136 = sphi 0, %s120
      %s142 = sphi 0, %s144
      %s145 = sphi 0, %s142
      %s146 = sphi 0, %s145
      %s162 = sphi 0, %s146
      %s168 = sphi 0, %s170
      %s171 = sphi 0, %s168
      %s172 = sphi 0, %s171
      %s188 = sphi 0, %s172
      %s194 = sphi 0, %s196
      %s197 = sphi 0, %s194
      %s198 = sphi 0, %s197
      %s214 = sphi 0, %s198
    $region4: #{tpu_custom_call.1} parent=1 // loop_header_branch
      %31 = sbr.rel (%p29) target = $region8
    $region5: #{tpu_custom_call.1} parent=1 // loop_body
      %s33 = ssub.s32 %s28, 1
      %s34 = ssub.s32 %s28, 2
      %s35 = sadd.s32 %s28, 1
      %s36 = ssub.s32 %s28, %s35
      %p37 = scmp.eq.s32.totalorder %s36, 0
      %s39 = sadd.s32 %s38, 1
      %s40 = scalar_select %p37, %s38, %s39
      %p43 = pneg %p37
      %p44 = scmp.eq.s32.totalorder %s28, 1
      %p45 = por %p43, %p44
      %p46 = scmp.ne.s32.totalorder %s38, %s41
      %p47 = scmp.eq.s32.totalorder %s28, 0
      %p48 = por %p46, %p47
      %p49 = scmp.ne.s32.totalorder %s38, %s41
      %p50 = scmp.eq.s32.totalorder %s33, 1
      %p51 = por %p49, %p50
      %p52 = scmp.ne.s32.totalorder %s41, %s42
      %p53 = scmp.eq.s32.totalorder %s33, 0
      %p54 = por %p52, %p53
      %p55 = scmp.ne.s32.totalorder %s41, %s42
      %p56 = scmp.eq.s32.totalorder %s34, 1
      %p57 = por %p55, %p56
      %p59 = scmp.ne.s32.totalorder %s42, %s58
      %p60 = scmp.eq.s32.totalorder %s34, 0
      %p61 = por %p59, %p60
      %s62 = ssub.s32 %s28, %s35
      %p63 = scmp.eq.s32.totalorder %s62, 0
      %s65 = sadd.s32 %s64, 1
      %s66 = scalar_select %p63, %s64, %s65
      %p69 = pneg %p63
      %p70 = scmp.eq.s32.totalorder %s28, 1
      %p71 = por %p69, %p70
      %p72 = scmp.ne.s32.totalorder %s64, %s67
      %p73 = scmp.eq.s32.totalorder %s28, 0
      %p74 = por %p72, %p73
      %p75 = scmp.ne.s32.totalorder %s64, %s67
      %p76 = scmp.eq.s32.totalorder %s33, 1
      %p77 = por %p75, %p76
      %p78 = scmp.ne.s32.totalorder %s67, %s68
      %p79 = scmp.eq.s32.totalorder %s33, 0
      %p80 = por %p78, %p79
      %p81 = scmp.ne.s32.totalorder %s67, %s68
      %p82 = scmp.eq.s32.totalorder %s34, 1
      %p83 = por %p81, %p82
      %p85 = scmp.ne.s32.totalorder %s68, %s84
      %p86 = scmp.eq.s32.totalorder %s34, 0
      %p87 = por %p85, %p86
      %s88 = ssub.s32 %s28, %s35
      %p89 = scmp.eq.s32.totalorder %s88, 0
      %s91 = sadd.s32 %s90, 1
      %s92 = scalar_select %p89, %s90, %s91
      %p95 = pneg %p89
      %p96 = scmp.eq.s32.totalorder %s28, 1
      %p97 = por %p95, %p96
      %p98 = scmp.ne.s32.totalorder %s90, %s93
      %p99 = scmp.eq.s32.totalorder %s28, 0
      %p100 = por %p98, %p99
      %p101 = scmp.ne.s32.totalorder %s90, %s93
      %p102 = scmp.eq.s32.totalorder %s33, 1
      %p103 = por %p101, %p102
      %p104 = scmp.ne.s32.totalorder %s93, %s94
      %p105 = scmp.eq.s32.totalorder %s33, 0
      %p106 = por %p104, %p105
      %p107 = scmp.ne.s32.totalorder %s93, %s94
      %p108 = scmp.eq.s32.totalorder %s34, 1
      %p109 = por %p107, %p108
      %p111 = scmp.ne.s32.totalorder %s94, %s110
      %p112 = scmp.eq.s32.totalorder %s34, 0
      %p113 = por %p111, %p112
      %s114 = ssub.s32 %s28, %s35
      %p115 = scmp.eq.s32.totalorder %s114, 0
      %s117 = sadd.s32 %s116, 1
      %s118 = scalar_select %p115, %s116, %s117
      %p121 = pneg %p115
      %p122 = scmp.eq.s32.totalorder %s28, 1
      %p123 = por %p121, %p122
      %p124 = scmp.ne.s32.totalorder %s116, %s119
      %p125 = scmp.eq.s32.totalorder %s28, 0
      %p126 = por %p124, %p125
      %p127 = scmp.ne.s32.totalorder %s116, %s119
      %p128 = scmp.eq.s32.totalorder %s33, 1
      %p129 = por %p127, %p128
      %p130 = scmp.ne.s32.totalorder %s119, %s120
      %p131 = scmp.eq.s32.totalorder %s33, 0
      %p132 = por %p130, %p131
      %p133 = scmp.ne.s32.totalorder %s119, %s120
      %p134 = scmp.eq.s32.totalorder %s34, 1
      %p135 = por %p133, %p134
      %p137 = scmp.ne.s32.totalorder %s120, %s136
      %p138 = scmp.eq.s32.totalorder %s34, 0
      %p139 = por %p137, %p138
      %s140 = ssub.s32 %s28, %s35
      %p141 = scmp.eq.s32.totalorder %s140, 0
      %s143 = sadd.s32 %s142, 1
      %s144 = scalar_select %p141, %s142, %s143
      %p147 = pneg %p141
      %p148 = scmp.eq.s32.totalorder %s28, 1
      %p149 = por %p147, %p148
      %p150 = scmp.ne.s32.totalorder %s142, %s145
      %p151 = scmp.eq.s32.totalorder %s28, 0
      %p152 = por %p150, %p151
      %p153 = scmp.ne.s32.totalorder %s142, %s145
      %p154 = scmp.eq.s32.totalorder %s33, 1
      %p155 = por %p153, %p154
      %p156 = scmp.ne.s32.totalorder %s145, %s146
      %p157 = scmp.eq.s32.totalorder %s33, 0
      %p158 = por %p156, %p157
      %p159 = scmp.ne.s32.totalorder %s145, %s146
      %p160 = scmp.eq.s32.totalorder %s34, 1
      %p161 = por %p159, %p160
      %p163 = scmp.ne.s32.totalorder %s146, %s162
      %p164 = scmp.eq.s32.totalorder %s34, 0
      %p165 = por %p163, %p164
      %s166 = ssub.s32 %s28, %s35
      %p167 = scmp.eq.s32.totalorder %s166, 0
      %s169 = sadd.s32 %s168, 1
      %s170 = scalar_select %p167, %s168, %s169
      %p173 = pneg %p167
      %p174 = scmp.eq.s32.totalorder %s28, 1
      %p175 = por %p173, %p174
      %p176 = scmp.ne.s32.totalorder %s168, %s171
      %p177 = scmp.eq.s32.totalorder %s28, 0
      %p178 = por %p176, %p177
      %p179 = scmp.ne.s32.totalorder %s168, %s171
      %p180 = scmp.eq.s32.totalorder %s33, 1
      %p181 = por %p179, %p180
      %p182 = scmp.ne.s32.totalorder %s171, %s172
      %p183 = scmp.eq.s32.totalorder %s33, 0
      %p184 = por %p182, %p183
      %p185 = scmp.ne.s32.totalorder %s171, %s172
      %p186 = scmp.eq.s32.totalorder %s34, 1
      %p187 = por %p185, %p186
      %p189 = scmp.ne.s32.totalorder %s172, %s188
      %p190 = scmp.eq.s32.totalorder %s34, 0
      %p191 = por %p189, %p190
      %s192 = ssub.s32 %s28, %s35
      %p193 = scmp.eq.s32.totalorder %s192, 0
      %s195 = sadd.s32 %s194, 1
      %s196 = scalar_select %p193, %s194, %s195
      %p199 = pneg %p193
      %p200 = scmp.eq.s32.totalorder %s28, 1
      %p201 = por %p199, %p200
      %p202 = scmp.ne.s32.totalorder %s194, %s197
      %p203 = scmp.eq.s32.totalorder %s28, 0
      %p204 = por %p202, %p203
      %p205 = scmp.ne.s32.totalorder %s194, %s197
      %p206 = scmp.eq.s32.totalorder %s33, 1
      %p207 = por %p205, %p206
      %p208 = scmp.ne.s32.totalorder %s197, %s198
      %p209 = scmp.eq.s32.totalorder %s33, 0
      %p210 = por %p208, %p209
      %p211 = scmp.ne.s32.totalorder %s197, %s198
      %p212 = scmp.eq.s32.totalorder %s34, 1
      %p213 = por %p211, %p212
      %p215 = scmp.ne.s32.totalorder %s198, %s214
      %p216 = scmp.eq.s32.totalorder %s34, 0
      %p217 = por %p215, %p216
      %p218 = scmp.le.s32.totalorder 1, %s28
      %p219 = scmp.lt.s32.totalorder %s28, 3
      %p220 = pnand %p218, %p219
      %p221 = pneg %p220
      // Predicated region
      $region9: #{tpu_custom_call.1} parent=5 // pred_check
        _
      $region10: #{tpu_custom_call.1} parent=5 // pred_check_branch
        %223 = sbr.rel (%p220) target = $region12
      $region11: #{tpu_custom_call.1} parent=5 // pred_region
        %s224 = ssub.s32 %s28, 1
      $region12: #{tpu_custom_call.1} parent=5 // pred_fallthru
        _
      %p225 = scmp.lt.s32.totalorder %s28, 2
      // Predicated region
      $region13: #{tpu_custom_call.1} parent=5 // pred_check
        %p226 = pneg %p225
      $region14: #{tpu_custom_call.1} parent=5 // pred_check_branch
        %228 = sbr.rel (%p226) target = $region16
      $region15: #{tpu_custom_call.1} parent=5 // pred_region
        // Predicated region
        $region17: #{tpu_custom_call.1} parent=15 // pred_check
          %p229 = pneg %p48
        $region18: #{tpu_custom_call.1} parent=15 // pred_check_branch
          %231 = sbr.rel (%p229) target = $region20
        $region19: #{tpu_custom_call.1} parent=15 // pred_region
          %s232 = sand.u32 %s38, 1
          %s233 = scalar_lea.sflag [#allocation3], %s232
          %s234 = sand.u32 %s38, 1
          %s235 = smul.addr %s234, 32
          %s236 = scalar_lea.vmem [#allocation2], %s235
          %s238 = ssub.s32 512, 512
          %239 = vsyncadd %s233, %s238
          %s240 = smul.addr %s28, 8
          %s241 = smul.addr %s240, 64
          %s242 = scalar_lea.hbm %s0, %s241
          %s243 = sshll.u32 %s236, 4
          %s244 = int_to_ptr.vmem [resolvable:$true] %s243
          %249 = dma.hbm_to_vmem [thread:$0]  %s242, 512, %s244, %s233, 64, 64, 4
        $region20: #{tpu_custom_call.1} parent=15 // pred_fallthru
          _
        // Predicated region
        $region21: #{tpu_custom_call.1} parent=15 // pred_check
          %p250 = pneg %p74
        $region22: #{tpu_custom_call.1} parent=15 // pred_check_branch
          %252 = sbr.rel (%p250) target = $region24
        $region23: #{tpu_custom_call.1} parent=15 // pred_region
          %s253 = sand.u32 %s64, 1
          %s254 = scalar_lea.sflag [#allocation6], %s253
          %s255 = sand.u32 %s64, 1
          %s256 = smul.addr %s255, 64
          %s257 = scalar_lea.vmem [#allocation5], %s256
          %s259 = ssub.s32 1024, 1024
          %260 = vsyncadd %s254, %s259
          %s261 = smul.addr %s28, 16
          %s262 = smul.addr %s261, 64
          %s263 = scalar_lea.hbm %s1, %s262
          %s264 = sshll.u32 %s257, 4
          %s265 = int_to_ptr.vmem [resolvable:$true] %s264
          %270 = dma.hbm_to_vmem [thread:$0]  %s263, 1024, %s265, %s254, 64, 64, 4
        $region24: #{tpu_custom_call.1} parent=15 // pred_fallthru
          _
      $region16: #{tpu_custom_call.1} parent=5 // pred_fallthru
        _
      %p271 = scmp.le.s32.totalorder 1, %s28
      %p272 = scmp.lt.s32.totalorder %s28, 3
      %p273 = pnand %p271, %p272
      %p274 = pneg %p273
      // Predicated region
      $region25: #{tpu_custom_call.1} parent=5 // pred_check
        _
      $region26: #{tpu_custom_call.1} parent=5 // pred_check_branch
        %276 = sbr.rel (%p273) target = $region28
      $region27: #{tpu_custom_call.1} parent=5 // pred_region
        %s277 = ssub.s32 %s28, 1
        %s278 = sand.u32 %s41, 1
        %s279 = scalar_lea.sflag [#allocation3], %s278
        %s280 = sand.u32 %s41, 1
        %s281 = smul.addr %s280, 32
        %s282 = scalar_lea.vmem [#allocation2], %s281
        // Predicated region
        $region29: #{tpu_custom_call.1} parent=27 // pred_check
          %p283 = pneg %p54
        $region30: #{tpu_custom_call.1} parent=27 // pred_check_branch
          %285 = sbr.rel (%p283) target = $region32
        $region31: #{tpu_custom_call.1} parent=27 // pred_region
          %286 = dma.done %s279, 512
        $region32: #{tpu_custom_call.1} parent=27 // pred_fallthru
          _
        %s287 = sand.u32 %s67, 1
        %s288 = scalar_lea.sflag [#allocation6], %s287
        %s289 = sand.u32 %s67, 1
        %s290 = smul.addr %s289, 64
        %s291 = scalar_lea.vmem [#allocation5], %s290
        // Predicated region
        $region33: #{tpu_custom_call.1} parent=27 // pred_check
          %p292 = pneg %p80
        $region34: #{tpu_custom_call.1} parent=27 // pred_check_branch
          %294 = sbr.rel (%p292) target = $region36
        $region35: #{tpu_custom_call.1} parent=27 // pred_region
          %295 = dma.done %s288, 1024
        $region36: #{tpu_custom_call.1} parent=27 // pred_fallthru
          _
        %s296 = sand.u32 %s41, 1
        %s297 = scalar_lea.sflag [#allocation3], %s296
        %s298 = sand.u32 %s41, 1
        %s299 = smul.addr %s298, 32
        %s300 = scalar_lea.vmem [#allocation2], %s299
        %p301 = pneg %p54
        %p302 = pneg %p51
        %s303 = sand.u32 %s67, 1
        %s304 = scalar_lea.sflag [#allocation6], %s303
        %s305 = sand.u32 %s67, 1
        %s306 = smul.addr %s305, 64
        %s307 = scalar_lea.vmem [#allocation5], %s306
        %p308 = pneg %p80
        %p309 = pneg %p77
        %p310 = pneg %p106
        %p311 = pneg %p103
        %s312 = sand.u32 %s93, 1
        %s313 = scalar_lea.sflag [#allocation4], %s312
        %s314 = sand.u32 %s93, 1
        %s315 = smul.addr %s314, 64
        %s316 = scalar_lea.vmem [#allocation7], %s315
        %p317 = pneg %p132
        %p318 = pneg %p129
        %s319 = sand.u32 %s33, 1
        %s320 = scalar_lea.sflag [#allocation9], %s319
        %s321 = sand.u32 %s119, 1
        %s322 = smul.addr %s321, 64
        %s323 = scalar_lea.vmem [#allocation8], %s322
        %p324 = pneg %p158
        %p325 = pneg %p155
        %s326 = sand.u32 %s33, 1
        %s327 = scalar_lea.sflag [#allocation9], %s326
        %s328 = sand.u32 %s145, 1
        %s329 = smul.addr %s328, 64
        %s330 = scalar_lea.vmem [#allocation10], %s329
        %p331 = pneg %p184
        %p332 = pneg %p181
        %s333 = sand.u32 %s33, 1
        %s334 = scalar_lea.sflag [#allocation12], %s333
        %s335 = sand.u32 %s171, 1
        %s336 = smul.addr %s335, 64
        %s337 = scalar_lea.vmem [#allocation11], %s336
        %p338 = pneg %p210
        %p339 = pneg %p207
        %s340 = sand.u32 %s33, 1
        %s341 = scalar_lea.sflag [#allocation12], %s340
        %s342 = sand.u32 %s197, 1
        %s343 = smul.addr %s342, 16
        %s344 = scalar_lea.vmem [#allocation13], %s343
        %v346 = vld [vmem:[%s282] sm:$0xf]
        %v347 = vld [vmem:[%s282 + $0x4] sm:$0xf]
        %v348 = vld [vmem:[%s282 + $0x8] sm:$0xf]
        %v349 = vld [vmem:[%s282 + $0xc] sm:$0xf]
        %v350 = vld [vmem:[%s282 + $0x10] sm:$0xf]
        %v351 = vld [vmem:[%s282 + $0x14] sm:$0xf]
        %v352 = vld [vmem:[%s282 + $0x18] sm:$0xf]
        %v353 = vld [vmem:[%s282 + $0x1c] sm:$0xf]
        %v354 = vld [vmem:[%s291] sm:$0xf]
        %v355 = vld [vmem:[%s291 + $0x4] sm:$0xf]
        %v356 = vld [vmem:[%s291 + $0x8] sm:$0xf]
        %v357 = vld [vmem:[%s291 + $0xc] sm:$0xf]
        %v358 = vld [vmem:[%s291 + $0x10] sm:$0xf]
        %v359 = vld [vmem:[%s291 + $0x14] sm:$0xf]
        %v360 = vld [vmem:[%s291 + $0x18] sm:$0xf]
        %v361 = vld [vmem:[%s291 + $0x1c] sm:$0xf]
        %v362 = vld [vmem:[%s291 + $0x20] sm:$0xf]
        %v363 = vld [vmem:[%s291 + $0x24] sm:$0xf]
        %v364 = vld [vmem:[%s291 + $0x28] sm:$0xf]
        %v365 = vld [vmem:[%s291 + $0x2c] sm:$0xf]
        %v366 = vld [vmem:[%s291 + $0x30] sm:$0xf]
        %v367 = vld [vmem:[%s291 + $0x34] sm:$0xf]
        %v368 = vld [vmem:[%s291 + $0x38] sm:$0xf]
        %v369 = vld [vmem:[%s291 + $0x3c] sm:$0xf]
        %v378 = vunpack.c.l.b16 %v346
        %v379 = vunpack.c.l.b16 %v347
        %v380 = vunpack.c.l.b16 %v348
        %v381 = vunpack.c.l.b16 %v349
        %v382 = vunpack.c.l.b16 %v350
        %v383 = vunpack.c.l.b16 %v351
        %v384 = vunpack.c.l.b16 %v352
        %v385 = vunpack.c.l.b16 %v353
        %v386 = vpack.c.b16 %v379, %v378
        %v387 = vpack.c.b16 %v381, %v380
        %v388 = vpack.c.b16 %v383, %v382
        %v389 = vpack.c.b16 %v385, %v384
        %v410 = vunpack.c.l.b16 %v354
        %v411 = vunpack.c.l.b16 %v355
        %v412 = vunpack.c.l.b16 %v356
        %v413 = vunpack.c.l.b16 %v357
        %v414 = vunpack.c.l.b16 %v358
        %v415 = vunpack.c.l.b16 %v359
        %v416 = vunpack.c.l.b16 %v360
        %v417 = vunpack.c.l.b16 %v361
        %v418 = vunpack.c.l.b16 %v362
        %v419 = vunpack.c.l.b16 %v363
        %v420 = vunpack.c.l.b16 %v364
        %v421 = vunpack.c.l.b16 %v365
        %v422 = vunpack.c.l.b16 %v366
        %v423 = vunpack.c.l.b16 %v367
        %v424 = vunpack.c.l.b16 %v368
        %v425 = vunpack.c.l.b16 %v369
        %v426 = vpack.c.b16 %v411, %v410
        %v427 = vpack.c.b16 %v413, %v412
        %v428 = vpack.c.b16 %v415, %v414
        %v429 = vpack.c.b16 %v417, %v416
        %v430 = vpack.c.b16 %v419, %v418
        %v431 = vpack.c.b16 %v421, %v420
        %v432 = vpack.c.b16 %v423, %v422
        %v433 = vpack.c.b16 %v425, %v424
        %442 = vmatprep.subr.bf16.mxu0 0
        %443 = vmatpush1.bf16.xpose.msra.mxu0 %v426
        %444 = vmatprep.subr.bf16.mxu0 0
        %445 = vmatpush1.bf16.xpose.msra.mxu0 %v427
        %446 = vmatprep.subr.bf16.mxu0 0
        %447 = vmatpush1.bf16.xpose.msra.mxu0 %v428
        %448 = vmatprep.subr.bf16.mxu0 0
        %449 = vmatpush1.bf16.xpose.msra.mxu0 %v429
        %450 = vmatprep.subr.bf16.mxu0 0
        %451 = vmatpush1.bf16.xpose.msra.mxu0 %v430
        %452 = vmatprep.subr.bf16.mxu0 0
        %453 = vmatpush1.bf16.xpose.msra.mxu0 %v431
        %454 = vmatprep.subr.bf16.mxu0 0
        %455 = vmatpush1.bf16.xpose.msra.mxu0 %v432
        %456 = vmatprep.subr.bf16.mxu0 0
        %457 = vmatpush1.bf16.xpose.msra.mxu0 %v433
        %458 = vmatprep.subr.bf16.mxu0 0
        %459 = vmatpush1.bf16.xpose.msra.mxu0 0
        %460 = vmatprep.subr.bf16.mxu0 0
        %461 = vmatpush1.bf16.xpose.msra.mxu0 0
        %462 = vmatprep.subr.bf16.mxu0 0
        %463 = vmatpush1.bf16.xpose.msra.mxu0 0
        %464 = vmatprep.subr.bf16.mxu0 0
        %465 = vmatpush1.bf16.xpose.msra.mxu0 0
        %466 = vmatprep.subr.bf16.mxu0 0
        %467 = vmatpush1.bf16.xpose.msra.mxu0 0
        %468 = vmatprep.subr.bf16.mxu0 0
        %469 = vmatpush1.bf16.xpose.msra.mxu0 0
        %470 = vmatprep.subr.bf16.mxu0 0
        %471 = vmatpush1.bf16.xpose.msra.mxu0 0
        %472 = vmatprep.subr.bf16.mxu0 0
        %473 = vmatpush1.bf16.xpose.msra.mxu0 0
        %474 = vmatprep.mubr.bf16.mxu0 0
        %475 = vmatmul.mubr.bf16.gmra.mrb[0].mxu0 %v386
        %v476 = vpop.f32.mrb[0].mxu0
        %v477 = vadd.f32 0.0, %v476
        %v478 = vpop.f32.mrb[0].mxu0
        %v479 = vpop.f32.mrb[0].mxu0
        %v480 = vadd.f32 0.0, %v479
        %v481 = vpop.f32.mrb[0].mxu0
        %482 = vmatprep.mubr.bf16.mxu0 0
        %483 = vmatmul.mubr.bf16.gmra.mrb[0].mxu0 %v387
        %v484 = vpop.f32.mrb[0].mxu0
        %v485 = vadd.f32 0.0, %v484
        %v486 = vpop.f32.mrb[0].mxu0
        %v487 = vpop.f32.mrb[0].mxu0
        %v488 = vadd.f32 0.0, %v487
        %v489 = vpop.f32.mrb[0].mxu0
        %490 = vmatprep.mubr.bf16.mxu0 0
        %491 = vmatmul.mubr.bf16.gmra.mrb[0].mxu0 %v388
        %v492 = vpop.f32.mrb[0].mxu0
        %v493 = vadd.f32 0.0, %v492
        %v494 = vpop.f32.mrb[0].mxu0
        %v495 = vpop.f32.mrb[0].mxu0
        %v496 = vadd.f32 0.0, %v495
        %v497 = vpop.f32.mrb[0].mxu0
        %498 = vmatprep.mubr.bf16.mxu0 0
        %499 = vmatmul.mubr.bf16.gmra.mrb[0].mxu0 %v389
        %v500 = vpop.f32.mrb[0].mxu0
        %v501 = vadd.f32 0.0, %v500
        %v502 = vpop.f32.mrb[0].mxu0
        %v503 = vpop.f32.mrb[0].mxu0
        %v504 = vadd.f32 0.0, %v503
        %v505 = vpop.f32.mrb[0].mxu0
        %506 = vdwg.mxu0
        %v507 = vlaneseq
        %v508 = vshrl.u32 %v507, 7
        %v509 = vadd.s32 %v508, 8
        %v510 = vadd.s32 %v508, 16
        %v511 = vadd.s32 %v508, 24
        %v512 = vadd.s32 %v508, 32
        %v513 = vadd.s32 %v508, 40
        %v514 = vadd.s32 %v508, 48
        %v515 = vadd.s32 %v508, 56
        %v516 = vlaneseq
        %v517 = vand.u32 %v516, 127
        %vm518 = vcmp.lt.s32.totalorder %v508, 64
        %vm519 = vcmp.lt.s32.totalorder %v509, 64
        %vm520 = vcmp.lt.s32.totalorder %v510, 64
        %vm521 = vcmp.lt.s32.totalorder %v511, 64
        %vm522 = vcmp.lt.s32.totalorder %v512, 64
        %vm523 = vcmp.lt.s32.totalorder %v513, 64
        %vm524 = vcmp.lt.s32.totalorder %v514, 64
        %vm525 = vcmp.lt.s32.totalorder %v515, 64
        %vm526 = vcmp.lt.s32.totalorder %v517, 64
        %vm527 = vmand %vm518, %vm526
        %vm528 = vmand %vm519, %vm526
        %vm529 = vmand %vm520, %vm526
        %vm530 = vmand %vm521, %vm526
        %vm531 = vmand %vm522, %vm526
        %vm532 = vmand %vm523, %vm526
        %vm533 = vmand %vm524, %vm526
        %vm534 = vmand %vm525, %vm526
        %v535 = vsel %vm527, %v477, -1e+30
        %v536 = vsel %vm528, %v480, -1e+30
        %v537 = vsel %vm529, %v485, -1e+30
        %v538 = vsel %vm530, %v488, -1e+30
        %v539 = vsel %vm531, %v493, -1e+30
        %v540 = vsel %vm532, %v496, -1e+30
        %v541 = vsel %vm533, %v501, -1e+30
        %v542 = vsel %vm534, %v504, -1e+30
        %543 = vst [vmem:[%s316] sm:$0xff] %v535
        %544 = vst [vmem:[%s316 + $0x8] sm:$0xff] %v536
        %545 = vst [vmem:[%s316 + $0x10] sm:$0xff] %v537
        %546 = vst [vmem:[%s316 + $0x18] sm:$0xff] %v538
        %547 = vst [vmem:[%s316 + $0x20] sm:$0xff] %v539
        %548 = vst [vmem:[%s316 + $0x28] sm:$0xff] %v540
        %549 = vst [vmem:[%s316 + $0x30] sm:$0xff] %v541
        %550 = vst [vmem:[%s316 + $0x38] sm:$0xff] %v542
        %551 = vmax.xlane.f32.xlu0 %v535
        %v552 = vpop.xlane.xlu0 %551
        %553 = vmax.xlane.f32.xlu0 %v536
        %v554 = vpop.xlane.xlu0 %553
        %555 = vmax.xlane.f32.xlu0 %v537
        %v556 = vpop.xlane.xlu0 %555
        %557 = vmax.xlane.f32.xlu0 %v538
        %v558 = vpop.xlane.xlu0 %557
        %559 = vmax.xlane.f32.xlu0 %v539
        %v560 = vpop.xlane.xlu0 %559
        %561 = vmax.xlane.f32.xlu0 %v540
        %v562 = vpop.xlane.xlu0 %561
        %563 = vmax.xlane.f32.xlu0 %v541
        %v564 = vpop.xlane.xlu0 %563
        %565 = vmax.xlane.f32.xlu0 %v542
        %v566 = vpop.xlane.xlu0 %565
        %v567 = vsub.f32 %v535, %v552
        %v568 = vsub.f32 %v536, %v554
        %v569 = vsub.f32 %v537, %v556
        %v570 = vsub.f32 %v538, %v558
        %v571 = vsub.f32 %v539, %v560
        %v572 = vsub.f32 %v540, %v562
        %v573 = vsub.f32 %v541, %v564
        %v574 = vsub.f32 %v542, %v566
        %v575 = vmul.f32 %v567, 1.442695
        %v576 = vpow.pop %v575
        %v577 = vmul.f32 %v568, 1.442695
        %v578 = vpow.pop %v577
        %v579 = vmul.f32 %v569, 1.442695
        %v580 = vpow.pop %v579
        %v581 = vmul.f32 %v570, 1.442695
        %v582 = vpow.pop %v581
        %v583 = vmul.f32 %v571, 1.442695
        %v584 = vpow.pop %v583
        %v585 = vmul.f32 %v572, 1.442695
        %v586 = vpow.pop %v585
        %v587 = vmul.f32 %v573, 1.442695
        %v588 = vpow.pop %v587
        %v589 = vmul.f32 %v574, 1.442695
        %v590 = vpow.pop %v589
        %591 = vadd.xlane.f32.xlu0 %v576
        %v592 = vpop.xlane.xlu0 %591
        %593 = vadd.xlane.f32.xlu0 %v578
        %v594 = vpop.xlane.xlu0 %593
        %595 = vadd.xlane.f32.xlu0 %v580
        %v596 = vpop.xlane.xlu0 %595
        %597 = vadd.xlane.f32.xlu0 %v582
        %v598 = vpop.xlane.xlu0 %597
        %599 = vadd.xlane.f32.xlu0 %v584
        %v600 = vpop.xlane.xlu0 %599
        %601 = vadd.xlane.f32.xlu0 %v586
        %v602 = vpop.xlane.xlu0 %601
        %603 = vadd.xlane.f32.xlu0 %v588
        %v604 = vpop.xlane.xlu0 %603
        %605 = vadd.xlane.f32.xlu0 %v590
        %v606 = vpop.xlane.xlu0 %605
        %v607 = vrcp.pop %v592
        %v608 = vmul.f32 %v576, %v607
        %v609 = vrcp.pop %v594
        %v610 = vmul.f32 %v578, %v609
        %v611 = vrcp.pop %v596
        %v612 = vmul.f32 %v580, %v611
        %v613 = vrcp.pop %v598
        %v614 = vmul.f32 %v582, %v613
        %v615 = vrcp.pop %v600
        %v616 = vmul.f32 %v584, %v615
        %v617 = vrcp.pop %v602
        %v618 = vmul.f32 %v586, %v617
        %v619 = vrcp.pop %v604
        %v620 = vmul.f32 %v588, %v619
        %v621 = vrcp.pop %v606
        %v622 = vmul.f32 %v590, %v621
        %v623 = vmax.f32 %v535, %v539
        %v624 = vmax.f32 %v536, %v540
        %v625 = vmax.f32 %v537, %v541
        %v626 = vmax.f32 %v538, %v542
        %v627 = vmax.f32 %v623, %v624
        %v628 = vmax.f32 %v625, %v626
        %v629 = vmax.f32 %v627, %v628
        %v630 = vrot.slane %v629, 4
        %v631 = vmax.f32 %v629, %v630
        %v632 = vrot.slane %v631, 2
        %v633 = vmax.f32 %v631, %v632
        %v634 = vrot.slane %v633, 1
        %v635 = vmax.f32 %v633, %v634
        %v636 = vsub.f32 %v535, %v635
        %v637 = vsub.f32 %v536, %v635
        %v638 = vsub.f32 %v537, %v635
        %v639 = vsub.f32 %v538, %v635
        %v640 = vsub.f32 %v539, %v635
        %v641 = vsub.f32 %v540, %v635
        %v642 = vsub.f32 %v541, %v635
        %v643 = vsub.f32 %v542, %v635
        %v644 = vmul.f32 %v636, 1.442695
        %v645 = vpow.pop %v644
        %v646 = vmul.f32 %v637, 1.442695
        %v647 = vpow.pop %v646
        %v648 = vmul.f32 %v638, 1.442695
        %v649 = vpow.pop %v648
        %v650 = vmul.f32 %v639, 1.442695
        %v651 = vpow.pop %v650
        %v652 = vmul.f32 %v640, 1.442695
        %v653 = vpow.pop %v652
        %v654 = vmul.f32 %v641, 1.442695
        %v655 = vpow.pop %v654
        %v656 = vmul.f32 %v642, 1.442695
        %v657 = vpow.pop %v656
        %v658 = vmul.f32 %v643, 1.442695
        %v659 = vpow.pop %v658
        %v660 = vadd.f32 %v645, %v647
        %v661 = vadd.f32 %v660, %v649
        %v662 = vadd.f32 %v661, %v651
        %v663 = vadd.f32 %v662, %v653
        %v664 = vadd.f32 %v663, %v655
        %v665 = vadd.f32 %v664, %v657
        %v666 = vadd.f32 %v665, %v659
        %v667 = vrot.slane %v666, 4
        %v668 = vadd.f32 %v666, %v667
        %v669 = vrot.slane %v668, 2
        %v670 = vadd.f32 %v668, %v669
        %v671 = vrot.slane %v670, 1
        %v672 = vadd.f32 %v670, %v671
        %v673 = vrcp.pop %v672
        %v674 = vmul.f32 %v645, %v673
        %v675 = vmul.f32 %v647, %v673
        %v676 = vmul.f32 %v649, %v673
        %v677 = vmul.f32 %v651, %v673
        %v678 = vmul.f32 %v653, %v673
        %v679 = vmul.f32 %v655, %v673
        %v680 = vmul.f32 %v657, %v673
        %v681 = vmul.f32 %v659, %v673
        %v682 = vmul.f32 %v674, %v608
        %v683 = vmul.f32 %v675, %v610
        %v684 = vmul.f32 %v676, %v612
        %v685 = vmul.f32 %v677, %v614
        %v686 = vmul.f32 %v678, %v616
        %v687 = vmul.f32 %v679, %v618
        %v688 = vmul.f32 %v680, %v620
        %v689 = vmul.f32 %v681, %v622
        %690 = vst [vmem:[%s323] sm:$0xff] %v682
        %691 = vst [vmem:[%s323 + $0x8] sm:$0xff] %v683
        %692 = vst [vmem:[%s323 + $0x10] sm:$0xff] %v684
        %693 = vst [vmem:[%s323 + $0x18] sm:$0xff] %v685
        %694 = vst [vmem:[%s323 + $0x20] sm:$0xff] %v686
        %695 = vst [vmem:[%s323 + $0x28] sm:$0xff] %v687
        %696 = vst [vmem:[%s323 + $0x30] sm:$0xff] %v688
        %697 = vst [vmem:[%s323 + $0x38] sm:$0xff] %v689
        %698 = vst [vmem:[%s330] sm:$0xff] %v674
        %699 = vst [vmem:[%s330 + $0x8] sm:$0xff] %v675
        %700 = vst [vmem:[%s330 + $0x10] sm:$0xff] %v676
        %701 = vst [vmem:[%s330 + $0x18] sm:$0xff] %v677
        %702 = vst [vmem:[%s330 + $0x20] sm:$0xff] %v678
        %703 = vst [vmem:[%s330 + $0x28] sm:$0xff] %v679
        %704 = vst [vmem:[%s330 + $0x30] sm:$0xff] %v680
        %705 = vst [vmem:[%s330 + $0x38] sm:$0xff] %v681
        %706 = vst [vmem:[%s337] sm:$0xff] %v608
        %707 = vst [vmem:[%s337 + $0x8] sm:$0xff] %v610
        %708 = vst [vmem:[%s337 + $0x10] sm:$0xff] %v612
        %709 = vst [vmem:[%s337 + $0x18] sm:$0xff] %v614
        %710 = vst [vmem:[%s337 + $0x20] sm:$0xff] %v616
        %711 = vst [vmem:[%s337 + $0x28] sm:$0xff] %v618
        %712 = vst [vmem:[%s337 + $0x30] sm:$0xff] %v620
        %713 = vst [vmem:[%s337 + $0x38] sm:$0xff] %v622
        %vm714 = vcmp.gt.f32.partialorder %v682, 0.2
        %vm715 = vcmp.gt.f32.partialorder %v683, 0.2
        %vm716 = vcmp.gt.f32.partialorder %v684, 0.2
        %vm717 = vcmp.gt.f32.partialorder %v685, 0.2
        %vm718 = vcmp.gt.f32.partialorder %v686, 0.2
        %vm719 = vcmp.gt.f32.partialorder %v687, 0.2
        %vm720 = vcmp.gt.f32.partialorder %v688, 0.2
        %vm721 = vcmp.gt.f32.partialorder %v689, 0.2
        %722 = vmax.xlane.f32.xlu0 %v682
        %v723 = vpop.xlane.xlu0 %722
        %724 = vmax.xlane.f32.xlu0 %v683
        %v725 = vpop.xlane.xlu0 %724
        %726 = vmax.xlane.f32.xlu0 %v684
        %v727 = vpop.xlane.xlu0 %726
        %728 = vmax.xlane.f32.xlu0 %v685
        %v729 = vpop.xlane.xlu0 %728
        %730 = vmax.xlane.f32.xlu0 %v686
        %v731 = vpop.xlane.xlu0 %730
        %732 = vmax.xlane.f32.xlu0 %v687
        %v733 = vpop.xlane.xlu0 %732
        %734 = vmax.xlane.f32.xlu0 %v688
        %v735 = vpop.xlane.xlu0 %734
        %736 = vmax.xlane.f32.xlu0 %v689
        %v737 = vpop.xlane.xlu0 %736
        %vm738 = vcmp.eq.f32.partialorder %v682, %v723
        %vm739 = vcmp.eq.f32.partialorder %v683, %v725
        %vm740 = vcmp.eq.f32.partialorder %v684, %v727
        %vm741 = vcmp.eq.f32.partialorder %v685, %v729
        %vm742 = vcmp.eq.f32.partialorder %v686, %v731
        %vm743 = vcmp.eq.f32.partialorder %v687, %v733
        %vm744 = vcmp.eq.f32.partialorder %v688, %v735
        %vm745 = vcmp.eq.f32.partialorder %v689, %v737
        %v746 = vmax.f32 %v682, %v686
        %v747 = vmax.f32 %v683, %v687
        %v748 = vmax.f32 %v684, %v688
        %v749 = vmax.f32 %v685, %v689
        %v750 = vmax.f32 %v746, %v747
        %v751 = vmax.f32 %v748, %v749
        %v752 = vmax.f32 %v750, %v751
        %v753 = vrot.slane %v752, 4
        %v754 = vmax.f32 %v752, %v753
        %v755 = vrot.slane %v754, 2
        %v756 = vmax.f32 %v754, %v755
        %v757 = vrot.slane %v756, 1
        %v758 = vmax.f32 %v756, %v757
        %vm759 = vcmp.eq.f32.partialorder %v682, %v758
        %vm760 = vcmp.eq.f32.partialorder %v683, %v758
        %vm761 = vcmp.eq.f32.partialorder %v684, %v758
        %vm762 = vcmp.eq.f32.partialorder %v685, %v758
        %vm763 = vcmp.eq.f32.partialorder %v686, %v758
        %vm764 = vcmp.eq.f32.partialorder %v687, %v758
        %vm765 = vcmp.eq.f32.partialorder %v688, %v758
        %vm766 = vcmp.eq.f32.partialorder %v689, %v758
        %vm767 = vmand %vm714, %vm738
        %vm768 = vmand %vm715, %vm739
        %vm769 = vmand %vm716, %vm740
        %vm770 = vmand %vm717, %vm741
        %vm771 = vmand %vm718, %vm742
        %vm772 = vmand %vm719, %vm743
        %vm773 = vmand %vm720, %vm744
        %vm774 = vmand %vm721, %vm745
        %vm775 = vmand %vm767, %vm759
        %vm776 = vmand %vm768, %vm760
        %vm777 = vmand %vm769, %vm761
        %vm778 = vmand %vm770, %vm762
        %vm779 = vmand %vm771, %vm763
        %vm780 = vmand %vm772, %vm764
        %vm781 = vmand %vm773, %vm765
        %vm782 = vmand %vm774, %vm766
        %v783 = vsel %vm775, 1, 0
        %v784 = vsel %vm776, 1, 0
        %v785 = vsel %vm777, 1, 0
        %v786 = vsel %vm778, 1, 0
        %v787 = vsel %vm779, 1, 0
        %v788 = vsel %vm780, 1, 0
        %v789 = vsel %vm781, 1, 0
        %v790 = vsel %vm782, 1, 0
        %v791 = vsel %vm738, 1, 0
        %v792 = vsel %vm739, 1, 0
        %v793 = vsel %vm740, 1, 0
        %v794 = vsel %vm741, 1, 0
        %v795 = vsel %vm742, 1, 0
        %v796 = vsel %vm743, 1, 0
        %v797 = vsel %vm744, 1, 0
        %v798 = vsel %vm745, 1, 0
        %v799 = vmul.u32 %v791, 2
        %v800 = vmul.u32 %v792, 2
        %v801 = vmul.u32 %v793, 2
        %v802 = vmul.u32 %v794, 2
        %v803 = vmul.u32 %v795, 2
        %v804 = vmul.u32 %v796, 2
        %v805 = vmul.u32 %v797, 2
        %v806 = vmul.u32 %v798, 2
        %v807 = vadd.s32 %v783, %v799
        %v808 = vadd.s32 %v784, %v800
        %v809 = vadd.s32 %v785, %v801
        %v810 = vadd.s32 %v786, %v802
        %v811 = vadd.s32 %v787, %v803
        %v812 = vadd.s32 %v788, %v804
        %v813 = vadd.s32 %v789, %v805
        %v814 = vadd.s32 %v790, %v806
        %v815 = vsel %vm759, 1, 0
        %v816 = vsel %vm760, 1, 0
        %v817 = vsel %vm761, 1, 0
        %v818 = vsel %vm762, 1, 0
        %v819 = vsel %vm763, 1, 0
        %v820 = vsel %vm764, 1, 0
        %v821 = vsel %vm765, 1, 0
        %v822 = vsel %vm766, 1, 0
        %v823 = vmul.u32 %v815, 4
        %v824 = vmul.u32 %v816, 4
        %v825 = vmul.u32 %v817, 4
        %v826 = vmul.u32 %v818, 4
        %v827 = vmul.u32 %v819, 4
        %v828 = vmul.u32 %v820, 4
        %v829 = vmul.u32 %v821, 4
        %v830 = vmul.u32 %v822, 4
        %v831 = vadd.s32 %v807, %v823
        %v832 = vadd.s32 %v808, %v824
        %v833 = vadd.s32 %v809, %v825
        %v834 = vadd.s32 %v810, %v826
        %v835 = vadd.s32 %v811, %v827
        %v836 = vadd.s32 %v812, %v828
        %v837 = vadd.s32 %v813, %v829
        %v838 = vadd.s32 %v814, %v830
        %v839 = vpack.c.b16 %v832, %v831
        %v840 = vpack.c.b16 %v834, %v833
        %v841 = vpack.c.b8 %v840, %v839
        %v842 = vpack.c.b16 %v836, %v835
        %v843 = vpack.c.b16 %v838, %v837
        %v844 = vpack.c.b8 %v843, %v842
        %845 = vst [vmem:[%s344] sm:$0xff] %v841
        %846 = vst [vmem:[%s344 + $0x8] sm:$0xff] %v844
        %s847 = sand.u32 %s93, 1
        %s848 = scalar_lea.sflag [#allocation4], %s847
        %s849 = sand.u32 %s93, 1
        %s850 = smul.addr %s849, 64
        %s851 = scalar_lea.vmem [#allocation7], %s850
        %s852 = sand.u32 %s33, 1
        %s853 = scalar_lea.sflag [#allocation9], %s852
        %s854 = sand.u32 %s119, 1
        %s855 = smul.addr %s854, 64
        %s856 = scalar_lea.vmem [#allocation8], %s855
        %s857 = sand.u32 %s33, 1
        %s858 = scalar_lea.sflag [#allocation9], %s857
        %s859 = sand.u32 %s145, 1
        %s860 = smul.addr %s859, 64
        %s861 = scalar_lea.vmem [#allocation10], %s860
        %s862 = sand.u32 %s33, 1
        %s863 = scalar_lea.sflag [#allocation12], %s862
        %s864 = sand.u32 %s171, 1
        %s865 = smul.addr %s864, 64
        %s866 = scalar_lea.vmem [#allocation11], %s865
        %s867 = sand.u32 %s33, 1
        %s868 = scalar_lea.sflag [#allocation12], %s867
        %s869 = sand.u32 %s197, 1
        %s870 = smul.addr %s869, 16
        %s871 = scalar_lea.vmem [#allocation13], %s870
        // Predicated region
        $region37: #{tpu_custom_call.1} parent=27 // pred_check
          %p872 = pneg %p103
        $region38: #{tpu_custom_call.1} parent=27 // pred_check_branch
          %874 = sbr.rel (%p872) target = $region40
        $region39: #{tpu_custom_call.1} parent=27 // pred_region
          %s876 = ssub.s32 1024, 1024
          %877 = vsyncadd %s848, %s876
          %s878 = smul.addr %s33, 8
          %s879 = smul.addr %s878, 128
          %s880 = scalar_lea.hbm %s2, %s879
          %s881 = sshll.u32 %s851, 4
          %s882 = int_to_ptr.vmem [resolvable:$true] %s881
          %887 = dma.vmem_to_hbm [thread:$0]  %s882, 1024, %s880, %s848, 128, 128, 8
        $region40: #{tpu_custom_call.1} parent=27 // pred_fallthru
          _
        // Predicated region
        $region41: #{tpu_custom_call.1} parent=27 // pred_check
          %p888 = pneg %p129
        $region42: #{tpu_custom_call.1} parent=27 // pred_check_branch
          %890 = sbr.rel (%p888) target = $region44
        $region43: #{tpu_custom_call.1} parent=27 // pred_region
          %s892 = ssub.s32 1024, 1024
          %893 = vsyncadd %s853, %s892
          %s894 = smul.addr %s33, 8
          %s895 = smul.addr %s894, 128
          %s896 = scalar_lea.hbm %s3, %s895
          %s897 = sshll.u32 %s856, 4
          %s898 = int_to_ptr.vmem [resolvable:$true] %s897
          %903 = dma.vmem_to_hbm [thread:$0]  %s898, 1024, %s896, %s853, 128, 128, 8
        $region44: #{tpu_custom_call.1} parent=27 // pred_fallthru
          _
        // Predicated region
        $region45: #{tpu_custom_call.1} parent=27 // pred_check
          %p904 = pneg %p155
        $region46: #{tpu_custom_call.1} parent=27 // pred_check_branch
          %906 = sbr.rel (%p904) target = $region48
        $region47: #{tpu_custom_call.1} parent=27 // pred_region
          %s908 = ssub.s32 1024, 1024
          %909 = vsyncadd %s858, %s908
          %s910 = smul.addr %s33, 8
          %s911 = smul.addr %s910, 128
          %s912 = scalar_lea.hbm %s4, %s911
          %s913 = sshll.u32 %s861, 4
          %s914 = int_to_ptr.vmem [resolvable:$true] %s913
          %919 = dma.vmem_to_hbm [thread:$0]  %s914, 1024, %s912, %s858, 128, 128, 8
        $region48: #{tpu_custom_call.1} parent=27 // pred_fallthru
          _
        // Predicated region
        $region49: #{tpu_custom_call.1} parent=27 // pred_check
          %p920 = pneg %p181
        $region50: #{tpu_custom_call.1} parent=27 // pred_check_branch
          %922 = sbr.rel (%p920) target = $region52
        $region51: #{tpu_custom_call.1} parent=27 // pred_region
          %s924 = ssub.s32 1024, 1024
          %925 = vsyncadd %s863, %s924
          %s926 = smul.addr %s33, 8
          %s927 = smul.addr %s926, 128
          %s928 = scalar_lea.hbm %s5, %s927
          %s929 = sshll.u32 %s866, 4
          %s930 = int_to_ptr.vmem [resolvable:$true] %s929
          %935 = dma.vmem_to_hbm [thread:$0]  %s930, 1024, %s928, %s863, 128, 128, 8
        $region52: #{tpu_custom_call.1} parent=27 // pred_fallthru
          _
        // Predicated region
        $region53: #{tpu_custom_call.1} parent=27 // pred_check
          %p936 = pneg %p207
        $region54: #{tpu_custom_call.1} parent=27 // pred_check_branch
          %938 = sbr.rel (%p936) target = $region56
        $region55: #{tpu_custom_call.1} parent=27 // pred_region
          %s940 = ssub.s32 256, 256
          %941 = vsyncadd %s868, %s940
          %s942 = smul.addr %s33, 2
          %s943 = smul.addr %s942, 128
          %s944 = scalar_lea.hbm %s6, %s943
          %s945 = sshll.u32 %s871, 4
          %s946 = int_to_ptr.vmem [resolvable:$true] %s945
          %951 = dma.vmem_to_hbm [thread:$0]  %s946, 256, %s944, %s868, 128, 128, 8
        $region56: #{tpu_custom_call.1} parent=27 // pred_fallthru
          _
      $region28: #{tpu_custom_call.1} parent=5 // pred_fallthru
        _
      %p952 = scmp.le.s32.totalorder 2, %s28
      // Predicated region
      $region57: #{tpu_custom_call.1} parent=5 // pred_check
        %p953 = pneg %p952
      $region58: #{tpu_custom_call.1} parent=5 // pred_check_branch
        %955 = sbr.rel (%p953) target = $region60
      $region59: #{tpu_custom_call.1} parent=5 // pred_region
        %s956 = ssub.s32 %s28, 2
        // Predicated region
        $region61: #{tpu_custom_call.1} parent=59 // pred_check
          %p957 = pneg %p109
        $region62: #{tpu_custom_call.1} parent=59 // pred_check_branch
          %959 = sbr.rel (%p957) target = $region64
        $region63: #{tpu_custom_call.1} parent=59 // pred_region
          %s960 = sand.u32 %s94, 1
          %s961 = scalar_lea.sflag [#allocation4], %s960
          %s962 = sand.u32 %s94, 1
          %s963 = smul.addr %s962, 64
          %s964 = scalar_lea.vmem [#allocation7], %s963
          %965 = dma.done %s961, 1024
        $region64: #{tpu_custom_call.1} parent=59 // pred_fallthru
          _
        // Predicated region
        $region65: #{tpu_custom_call.1} parent=59 // pred_check
          %p966 = pneg %p135
        $region66: #{tpu_custom_call.1} parent=59 // pred_check_branch
          %968 = sbr.rel (%p966) target = $region68
        $region67: #{tpu_custom_call.1} parent=59 // pred_region
          %s969 = sand.u32 %s34, 1
          %s970 = scalar_lea.sflag [#allocation9], %s969
          %s971 = sand.u32 %s120, 1
          %s972 = smul.addr %s971, 64
          %s973 = scalar_lea.vmem [#allocation8], %s972
          %974 = dma.done %s970, 1024
        $region68: #{tpu_custom_call.1} parent=59 // pred_fallthru
          _
        // Predicated region
        $region69: #{tpu_custom_call.1} parent=59 // pred_check
          %p975 = pneg %p161
        $region70: #{tpu_custom_call.1} parent=59 // pred_check_branch
          %977 = sbr.rel (%p975) target = $region72
        $region71: #{tpu_custom_call.1} parent=59 // pred_region
          %s978 = sand.u32 %s34, 1
          %s979 = scalar_lea.sflag [#allocation9], %s978
          %s980 = sand.u32 %s146, 1
          %s981 = smul.addr %s980, 64
          %s982 = scalar_lea.vmem [#allocation10], %s981
          %983 = dma.done %s979, 1024
        $region72: #{tpu_custom_call.1} parent=59 // pred_fallthru
          _
        // Predicated region
        $region73: #{tpu_custom_call.1} parent=59 // pred_check
          %p984 = pneg %p187
        $region74: #{tpu_custom_call.1} parent=59 // pred_check_branch
          %986 = sbr.rel (%p984) target = $region76
        $region75: #{tpu_custom_call.1} parent=59 // pred_region
          %s987 = sand.u32 %s34, 1
          %s988 = scalar_lea.sflag [#allocation12], %s987
          %s989 = sand.u32 %s172, 1
          %s990 = smul.addr %s989, 64
          %s991 = scalar_lea.vmem [#allocation11], %s990
          %992 = dma.done %s988, 1024
        $region76: #{tpu_custom_call.1} parent=59 // pred_fallthru
          _
        // Predicated region
        $region77: #{tpu_custom_call.1} parent=59 // pred_check
          %p993 = pneg %p213
        $region78: #{tpu_custom_call.1} parent=59 // pred_check_branch
          %995 = sbr.rel (%p993) target = $region80
        $region79: #{tpu_custom_call.1} parent=59 // pred_region
          %s996 = sand.u32 %s34, 1
          %s997 = scalar_lea.sflag [#allocation12], %s996
          %s998 = sand.u32 %s198, 1
          %s999 = smul.addr %s998, 16
          %s1000 = scalar_lea.vmem [#allocation13], %s999
          %1001 = dma.done %s997, 256
        $region80: #{tpu_custom_call.1} parent=59 // pred_fallthru
          _
      $region60: #{tpu_custom_call.1} parent=5 // pred_fallthru
        _
    $region6: #{tpu_custom_call.1} parent=1 // loop_footer
      %s32 = sadd.s32 1, %s28
    $region7: #{tpu_custom_call.1} parent=1 // loop_footer_branch
      %27 = sbr.rel target = $region3
    $region8: #{tpu_custom_call.1} parent=1 // loop_exit
      _
    %1002 = vsyncpa [#allocation3], 1
    %s1003 = scalar_lea.sflag [#allocation3], 1
    %1004 = vsyncpa %s1003, 1
    %1005 = vsyncpa [#allocation6], 1
    %s1006 = scalar_lea.sflag [#allocation6], 1
    %1007 = vsyncpa %s1006, 1
    %1008 = vsyncpa [#allocation4], 1
    %s1009 = scalar_lea.sflag [#allocation4], 1
    %1010 = vsyncpa %s1009, 1
    %1011 = vsyncpa [#allocation9], 1
    %s1012 = scalar_lea.sflag [#allocation9], 1
    %1013 = vsyncpa %s1012, 1
    %1014 = vsyncpa [#allocation12], 1
    %s1015 = scalar_lea.sflag [#allocation12], 1
    %1016 = vsyncpa %s1015, 1

</llo_original>
